<compile_context>
chip_gen: v6e
topology: v6e:2x2x1
jax: 0.10.0
libtpu: 0.0.40
codegen_flags: <defaults>
</compile_context>

<pallas_src>
import jax
import jax.numpy as jnp
from jax.experimental import pallas as pl
from jax.experimental.pallas import tpu as pltpu


def bahdanau_kernel(q_ref, k_ref, wa_ref, ua_ref, bias_ref, va_ref,
                    ctx_ref, w_ref):
    bt, s, h = k_ref.shape
    q = q_ref[...]                        # (Bt, H)    (possibly bf16)
    keys = k_ref[...]                     # (Bt, S, H) (possibly bf16)

    # MXU matmuls with f32 accumulation.
    wa_q = jnp.dot(q, wa_ref[...],
                   preferred_element_type=jnp.float32)                    # (Bt, H)
    ua_k = jnp.dot(keys.reshape(bt * s, h), ua_ref[...],
                   preferred_element_type=jnp.float32).reshape(bt, s, h)  # (Bt, S, H)

    # e = tanh(Wa q + Ua k + (ba + bu)); single query row broadcast over S keys.
    e = jnp.tanh(ua_k + wa_q[:, None, :] + bias_ref[...])                 # (Bt, S, H)

    # Va projection as VPU multiply + lane (last-axis) reduction; avoids an N=1
    # matmul.  Va's scalar bias is omitted: softmax(x + c) == softmax(x).
    scores = jnp.sum(e * va_ref[...], axis=-1)                            # (Bt, S)

    # Numerically stable softmax over the sequence (lane) axis.
    m = jnp.max(scores, axis=-1, keepdims=True)
    p = jnp.exp(scores - m)
    w = p / jnp.sum(p, axis=-1, keepdims=True)                            # (Bt, S)

    # context[b] = sum_s w[b, s] * keys[b, s, :]  (f32 accumulation)
    ctx = jnp.sum(w[:, :, None] * keys.astype(jnp.float32), axis=1)       # (Bt, H)

    ctx_ref[...] = ctx.astype(ctx_ref.dtype)
    w_ref[...] = w.astype(w_ref.dtype)    # lane-dense (Bt, S) store


def _pick_block_b(batch, max_tile=64):
    """Batch-tile size: divides `batch`; is a multiple of 8 (sublane rule) or the
    full batch; targets a large MXU M-dim while leaving >=2 grid steps on bigger
    batches so both v7x TensorCores can be used."""
    if batch <= max_tile and batch % 8 != 0:
        return batch                       # small ragged batch: one full-batch tile
    cap = min(max_tile, batch // 2) if batch >= 16 else batch
    best = batch
    d = 8
    while d <= cap:
        if batch % d == 0:
            best = d
        d += 8
    return best


def bahdanau_attention(query, keys, params, *, block_b=None, mxu_dtype=None):
    """query: (B, 1, H); keys: (B, S, H) -> (context (B, 1, H), weights (B, 1, S))."""
    B, Q, H = query.shape
    assert Q == 1, "decoder query is a single step (B, 1, H)"
    S = keys.shape[1]

    if block_b is None:
        block_b = _pick_block_b(B)
    assert B % block_b == 0

    out_dtype = query.dtype

    # Pre-transpose weights to (in, out); fold the Wa/Ua biases into one row.
    wa_t = params["wa_w"].T                                     # (H, H)
    ua_t = params["ua_w"].T                                     # (H, H)
    va_row = params["va_w"].reshape(1, H).astype(jnp.float32)   # (1, H)
    bias_row = (params["wa_b"] + params["ua_b"]).reshape(1, H).astype(jnp.float32)
    # params["va_b"] intentionally unused: softmax is invariant to a constant shift.

    q2d = query.reshape(B, H)              # pure reshape (drop the length-1 axis)
    keys_in = keys
    if mxu_dtype is not None:              # bf16 MXU operands on v6e/v7x; accum stays f32
        q2d = q2d.astype(mxu_dtype)
        keys_in = keys.astype(mxu_dtype)
        wa_t = wa_t.astype(mxu_dtype)
        ua_t = ua_t.astype(mxu_dtype)

    grid = (B // block_b,)
    ctx2d, w2d = pl.pallas_call(
        bahdanau_kernel,
        out_shape=(
            jax.ShapeDtypeStruct((B, H), out_dtype),
            jax.ShapeDtypeStruct((B, S), out_dtype),
        ),
        grid_spec=pltpu.PrefetchScalarGridSpec(
            num_scalar_prefetch=0,
            grid=grid,
            in_specs=[
                pl.BlockSpec((block_b, H), lambda g: (g, 0)),        # query (B, H)
                pl.BlockSpec((block_b, S, H), lambda g: (g, 0, 0)),  # keys  (B, S, H)
                pl.BlockSpec((H, H), lambda g: (0, 0)),              # Wa^T
                pl.BlockSpec((H, H), lambda g: (0, 0)),              # Ua^T
                pl.BlockSpec((1, H), lambda g: (0, 0)),              # ba + bu
                pl.BlockSpec((1, H), lambda g: (0, 0)),              # Va row
            ],
            out_specs=[
                pl.BlockSpec((block_b, H), lambda g: (g, 0)),        # context
                pl.BlockSpec((block_b, S), lambda g: (g, 0)),        # weights (lane-dense)
            ],
        ),
        compiler_params=pltpu.CompilerParams(dimension_semantics=("parallel",)),
    )(q2d, keys_in, wa_t, ua_t, bias_row, va_row)

    # Pure reshapes, no transposes: (B,H)->(B,1,H), (B,S)->(B,1,S).
    return ctx2d.reshape(B, 1, H), w2d.reshape(B, 1, S)


def reference(query, keys, p):
    wa = query @ p["wa_w"].T + p["wa_b"]
    ua = keys @ p["ua_w"].T + p["ua_b"]
    scores = jnp.tanh(wa + ua) @ p["va_w"].T + p["va_b"]         # (B, S, 1)
    scores = jnp.transpose(scores, (0, 2, 1))                    # (B, 1, S)
    w = jax.nn.softmax(scores, axis=-1)
    ctx = jnp.einsum("bqs,bsh->bqh", w, keys)
    return ctx, w


def init_params(key, hidden_size):
    # Deterministic init mimicking nn.Linear's uniform(-1/sqrt(fan_in), 1/sqrt(fan_in)).
    ks = jax.random.split(key, 6)
    bound = 1.0 / jnp.sqrt(hidden_size)
    u = lambda k, shape: jax.random.uniform(k, shape, jnp.float32, -bound, bound)
    return {
        "wa_w": u(ks[0], (hidden_size, hidden_size)),
        "wa_b": u(ks[1], (hidden_size,)),
        "ua_w": u(ks[2], (hidden_size, hidden_size)),
        "ua_b": u(ks[3], (hidden_size,)),
        "va_w": u(ks[4], (1, hidden_size)),
        "va_b": u(ks[5], (1,)),
    }


if __name__ == "__main__":
    root_key = jax.random.PRNGKey(0)

    def run_case(B, S, H, mxu_dtype=None, atol=2e-5, rtol=2e-5):
        kp, kq, kk = jax.random.split(jax.random.fold_in(root_key, B * 1000 + S), 3)
        params = init_params(kp, H)
        query = jax.random.normal(kq, (B, 1, H), jnp.float32)
        keys = jax.random.normal(kk, (B, S, H), jnp.float32)

        ctx, weights = bahdanau_attention(query, keys, params, mxu_dtype=mxu_dtype)
        jax.block_until_ready((ctx, weights))

        ctx_ref, w_ref = reference(query, keys, params)
        assert ctx.shape == (B, 1, H) and weights.shape == (B, 1, S)
        assert jnp.allclose(ctx, ctx_ref, atol=atol, rtol=rtol), ("ctx", B, S, H, mxu_dtype)
        assert jnp.allclose(weights, w_ref, atol=atol, rtol=rtol), ("w", B, S, H, mxu_dtype)

    H = 128  # hidden_size in the module
    run_case(B=2, S=8, H=H)                       # tiny shape, single-tile path
    run_case(B=16, S=16, H=H)                     # batch-tiled path: block_b=8, grid=(2,)
    run_case(B=2, S=8, H=H, mxu_dtype=jnp.bfloat16, atol=5e-2, rtol=5e-2)  # bf16 MXU operands

    print("KERNEL_OK")
</pallas_src>

<mosaic_0001>
module attributes {stable_mosaic.version = 11 : i64} {
  func.func @bahdanau_kernel(%arg0: i32, %arg1: memref<2x128xf32, #tpu.memory_space<vmem>>, %arg2: memref<2x8x128xf32, #tpu.memory_space<vmem>>, %arg3: memref<128x128xf32, #tpu.memory_space<vmem>>, %arg4: memref<128x128xf32, #tpu.memory_space<vmem>>, %arg5: memref<1x128xf32, #tpu.memory_space<vmem>>, %arg6: memref<1x128xf32, #tpu.memory_space<vmem>>, %arg7: memref<2x128xf32, #tpu.memory_space<vmem>>, %arg8: memref<2x8xf32, #tpu.memory_space<vmem>>) attributes {dimension_semantics = [#tpu.dimension_semantics<parallel>], iteration_bounds = array<i64: 1>, scalar_prefetch = 0 : i64, scratch_operands = 0 : i64, tpu.core_type = #tpu.core_type<tc>, window_params = [{transform_indices = @transform_0, window_bounds = array<i64: 2, 128>}, {transform_indices = @transform_1, window_bounds = array<i64: 2, 8, 128>}, {pipeline_mode = #tpu.pipeline_mode<synchronous>, transform_indices = @transform_2, window_bounds = array<i64: 128, 128>}, {pipeline_mode = #tpu.pipeline_mode<synchronous>, transform_indices = @transform_3, window_bounds = array<i64: 128, 128>}, {pipeline_mode = #tpu.pipeline_mode<synchronous>, transform_indices = @transform_4, window_bounds = array<i64: 1, 128>}, {pipeline_mode = #tpu.pipeline_mode<synchronous>, transform_indices = @transform_5, window_bounds = array<i64: 1, 128>}, {transform_indices = @transform_6, window_bounds = array<i64: 2, 128>}, {transform_indices = @transform_7, window_bounds = array<i64: 2, 8>}]} {
    %c0 = arith.constant 0 : index
    %c0_0 = arith.constant 0 : index
    %0 = vector.load %arg1[%c0, %c0_0] : memref<2x128xf32, #tpu.memory_space<vmem>>, vector<2x128xf32>
    %c0_1 = arith.constant 0 : index
    %c0_2 = arith.constant 0 : index
    %c0_3 = arith.constant 0 : index
    %1 = vector.load %arg2[%c0_1, %c0_2, %c0_3] : memref<2x8x128xf32, #tpu.memory_space<vmem>>, vector<2x8x128xf32>
    %c0_4 = arith.constant 0 : index
    %c0_5 = arith.constant 0 : index
    %2 = vector.load %arg3[%c0_4, %c0_5] : memref<128x128xf32, #tpu.memory_space<vmem>>, vector<128x128xf32>
    %cst = arith.constant dense<0.000000e+00> : vector<2x128xf32>
    %3 = tpu.matmul %0, %2, %cst {dimension_numbers = #tpu.dot_dimension_numbers<[1], [0], [0], [1], [0, 0, 1, 1], [], []>} : vector<2x128xf32>, vector<128x128xf32>, vector<2x128xf32> -> vector<2x128xf32>
    %4 = vector.shape_cast %1 : vector<2x8x128xf32> to vector<16x128xf32>
    %c0_6 = arith.constant 0 : index
    %c0_7 = arith.constant 0 : index
    %5 = vector.load %arg4[%c0_6, %c0_7] : memref<128x128xf32, #tpu.memory_space<vmem>>, vector<128x128xf32>
    %cst_8 = arith.constant dense<0.000000e+00> : vector<16x128xf32>
    %6 = tpu.matmul %4, %5, %cst_8 {dimension_numbers = #tpu.dot_dimension_numbers<[1], [0], [0], [1], [0, 0, 1, 1], [], []>} : vector<16x128xf32>, vector<128x128xf32>, vector<16x128xf32> -> vector<16x128xf32>
    %7 = vector.shape_cast %6 : vector<16x128xf32> to vector<2x8x128xf32>
    %8 = vector.shape_cast %3 : vector<2x128xf32> to vector<2x1x128xf32>
    %9 = vector.broadcast %8 : vector<2x1x128xf32> to vector<2x8x128xf32>
    %10 = arith.addf %7, %9 : vector<2x8x128xf32>
    %c0_9 = arith.constant 0 : index
    %c0_10 = arith.constant 0 : index
    %11 = vector.load %arg5[%c0_9, %c0_10] : memref<1x128xf32, #tpu.memory_space<vmem>>, vector<1x128xf32>
    %12 = vector.shape_cast %11 : vector<1x128xf32> to vector<1x1x128xf32>
    %13 = vector.broadcast %12 : vector<1x1x128xf32> to vector<2x8x128xf32>
    %14 = arith.addf %10, %13 : vector<2x8x128xf32>
    %15 = math.tanh %14 : vector<2x8x128xf32>
    %c0_11 = arith.constant 0 : index
    %c0_12 = arith.constant 0 : index
    %16 = vector.load %arg6[%c0_11, %c0_12] : memref<1x128xf32, #tpu.memory_space<vmem>>, vector<1x128xf32>
    %17 = vector.shape_cast %16 : vector<1x128xf32> to vector<1x1x128xf32>
    %18 = vector.broadcast %17 : vector<1x1x128xf32> to vector<2x8x128xf32>
    %19 = arith.mulf %15, %18 : vector<2x8x128xf32>
    %cst_13 = arith.constant dense<0.000000e+00> : vector<2x8xf32>
    %20 = vector.multi_reduction <add>, %19, %cst_13 [2] : vector<2x8x128xf32> to vector<2x8xf32>
    %cst_14 = arith.constant dense<0xFF800000> : vector<2xf32>
    %21 = vector.multi_reduction <maximumf>, %20, %cst_14 [1] : vector<2x8xf32> to vector<2xf32>
    %22 = vector.shape_cast %21 : vector<2xf32> to vector<2x1xf32>
    %23 = vector.broadcast %22 : vector<2x1xf32> to vector<2x8xf32>
    %24 = arith.subf %20, %23 : vector<2x8xf32>
    %25 = math.exp %24 : vector<2x8xf32>
    %cst_15 = arith.constant dense<0.000000e+00> : vector<2xf32>
    %26 = vector.multi_reduction <add>, %25, %cst_15 [1] : vector<2x8xf32> to vector<2xf32>
    %27 = vector.shape_cast %26 : vector<2xf32> to vector<2x1xf32>
    %28 = vector.broadcast %27 : vector<2x1xf32> to vector<2x8xf32>
    %29 = arith.divf %25, %28 : vector<2x8xf32>
    %30 = vector.shape_cast %29 : vector<2x8xf32> to vector<2x8x1xf32>
    %31 = vector.broadcast %30 : vector<2x8x1xf32> to vector<2x8x128xf32>
    %32 = arith.mulf %31, %1 : vector<2x8x128xf32>
    %cst_16 = arith.constant dense<0.000000e+00> : vector<2x128xf32>
    %33 = vector.multi_reduction <add>, %32, %cst_16 [1] : vector<2x8x128xf32> to vector<2x128xf32>
    %c0_17 = arith.constant 0 : index
    %c0_18 = arith.constant 0 : index
    %34 = vector.load %arg7[%c0_17, %c0_18] : memref<2x128xf32, #tpu.memory_space<vmem>>, vector<2x128xf32>
    tpu.vector_store %arg7[%c0_17, %c0_18], %33 {strides = array<i32>} : memref<2x128xf32, #tpu.memory_space<vmem>>, vector<2x128xf32>,
    %c0_19 = arith.constant 0 : index
    %c0_20 = arith.constant 0 : index
    %35 = vector.load %arg8[%c0_19, %c0_20] : memref<2x8xf32, #tpu.memory_space<vmem>>, vector<2x8xf32>
    tpu.vector_store %arg8[%c0_19, %c0_20], %29 {strides = array<i32>} : memref<2x8xf32, #tpu.memory_space<vmem>>, vector<2x8xf32>,
    return
  }
  func.func @transform_0(%arg0: i32) -> (i32, i32) {
    %c0_i32 = arith.constant 0 : i32
    %c0_i32_0 = arith.constant 0 : i32
    return %arg0, %c0_i32 : i32, i32
  }
  func.func @transform_1(%arg0: i32) -> (i32, i32, i32) {
    %c0_i32 = arith.constant 0 : i32
    %c0_i32_0 = arith.constant 0 : i32
    %c0_i32_1 = arith.constant 0 : i32
    return %arg0, %c0_i32, %c0_i32_0 : i32, i32, i32
  }
  func.func @transform_2(%arg0: i32) -> (i32, i32) {
    %c0_i32 = arith.constant 0 : i32
    %c0_i32_0 = arith.constant 0 : i32
    %c0_i32_1 = arith.constant 0 : i32
    return %c0_i32, %c0_i32_0 : i32, i32
  }
  func.func @transform_3(%arg0: i32) -> (i32, i32) {
    %c0_i32 = arith.constant 0 : i32
    %c0_i32_0 = arith.constant 0 : i32
    %c0_i32_1 = arith.constant 0 : i32
    return %c0_i32, %c0_i32_0 : i32, i32
  }
  func.func @transform_4(%arg0: i32) -> (i32, i32) {
    %c0_i32 = arith.constant 0 : i32
    %c0_i32_0 = arith.constant 0 : i32
    %c0_i32_1 = arith.constant 0 : i32
    return %c0_i32, %c0_i32_0 : i32, i32
  }
  func.func @transform_5(%arg0: i32) -> (i32, i32) {
    %c0_i32 = arith.constant 0 : i32
    %c0_i32_0 = arith.constant 0 : i32
    %c0_i32_1 = arith.constant 0 : i32
    return %c0_i32, %c0_i32_0 : i32, i32
  }
  func.func @transform_6(%arg0: i32) -> (i32, i32) {
    %c0_i32 = arith.constant 0 : i32
    %c0_i32_0 = arith.constant 0 : i32
    return %arg0, %c0_i32 : i32, i32
  }
  func.func @transform_7(%arg0: i32) -> (i32, i32) {
    %c0_i32 = arith.constant 0 : i32
    %c0_i32_0 = arith.constant 0 : i32
    return %arg0, %c0_i32 : i32, i32
  }
}

</mosaic_0001>

<llo_original>
// kernel: tpu_custom_call.1
$region0: #{tpu_custom_call.1}
  #allocation0 [shape = 'u32[]', space=smem, size = 0x4, offset = 0x4, fixed_abs, tag = 'smem constant byte address 0x4 - core index']
  #allocation1 [shape = 'u32[144,128]{1,0:T(1,128)}', space=vmem, size = 0x12000, scoped, tag = 'internal scratch']
  %s0 = inlined_call_operand.hbm [shape: f32[2,128], index: 0, kind: input, shape index: {}]
  %s1 = inlined_call_operand.hbm [shape: f32[2,8,128], index: 1, kind: input, shape index: {}]
  %s2 = inlined_call_operand.hbm [shape: f32[128,128], index: 2, kind: input, shape index: {}]
  %s3 = inlined_call_operand.hbm [shape: f32[128,128], index: 3, kind: input, shape index: {}]
  %s4 = inlined_call_operand.vmem [shape: f32[1,128], index: 4, kind: input, shape index: {}]
  %s5 = inlined_call_operand.vmem [shape: f32[1,128], index: 5, kind: input, shape index: {}]
  %s6 = inlined_call_operand.hbm [shape: f32[2,128], index: 6, kind: output, shape index: {0}]
  %s7 = inlined_call_operand.hbm [shape: f32[2,8], index: 7, kind: output, shape index: {1}]
  %8 = xla_tuple %s6, %s7
  %s9 = sld [smem:[#allocation0]]
  $region58: #{tpu_custom_call.1} parent=0
    _
  %s11 = ssub.s32 1, %s9
  %s12 = scalar_select 0, %s11, %s9
  $region1: #{tpu_custom_call.1} parent=0
    #allocation2 [shape = 'u8[1024]{0}', space=vmem, size = 0x400, scoped, tag = 'input window, operand 0, single buffered']
    #allocation3 [shape = 's32[1]{0}', space=sflag, size = 0x4, scoped, tag = 'scoped memory for tpu_custom_call.1']
    #allocation4 [shape = 's32[1]{0}', space=sflag, size = 0x4, scoped, tag = 'scoped memory for tpu_custom_call.1']
    #allocation5 [shape = 'u8[8192]{0}', space=vmem, size = 0x2000, scoped, tag = 'input window, operand 1, single buffered']
    #allocation6 [shape = 's32[1]{0}', space=sflag, size = 0x4, scoped, tag = 'scoped memory for tpu_custom_call.1']
    #allocation7 [shape = 'u8[65536]{0}', space=vmem, size = 0x10000, scoped, tag = 'input window, operand 2, single buffered']
    #allocation8 [shape = 'u8[65536]{0}', space=vmem, size = 0x10000, scoped, tag = 'input window, operand 3, single buffered']
    #allocation9 [shape = 's32[1]{0}', space=sflag, size = 0x4, scoped, tag = 'scoped memory for tpu_custom_call.1']
    #allocation10 [shape = 'u8[1024]{0}', space=vmem, size = 0x400, scoped, tag = 'output window, operand 0, single buffered']
    #allocation11 [shape = 'u8[1024]{0}', space=vmem, size = 0x400, scoped, tag = 'output window, operand 1, single buffered']
    #allocation12 [shape = 's32[1]{0}', space=sflag, size = 0x4, scoped, tag = 'scoped memory for tpu_custom_call.1']
    %13 = vsyncpa [#allocation3], 0
    %14 = vsyncpa [#allocation6], 0
    %15 = vsyncpa [#allocation9], 0
    %16 = vsyncpa [#allocation4], 0
    %17 = vsyncpa [#allocation12], 0
    // Predicated region
    $region2: #{tpu_custom_call.1} parent=1 // pred_check
      _
    $region3: #{tpu_custom_call.1} parent=1 // pred_check_branch
      %19 = sbr.rel (0) target = $region5
    $region4: #{tpu_custom_call.1} parent=1 // pred_region
      %s21 = ssub.s32 32, 32
      %22 = vsyncadd [#allocation3], %s21
      %s24 = sshll.u32 [#allocation2], 4
      %s25 = int_to_ptr.vmem [resolvable:$true] %s24
      %27 = dma.hbm_to_vmem [thread:$0]  %s0, 32, %s25, [#allocation3]
    $region5: #{tpu_custom_call.1} parent=1 // pred_fallthru
      _
    // Predicated region
    $region6: #{tpu_custom_call.1} parent=1 // pred_check
      _
    $region7: #{tpu_custom_call.1} parent=1 // pred_check_branch
      %29 = sbr.rel (0) target = $region9
    $region8: #{tpu_custom_call.1} parent=1 // pred_region
      %s31 = ssub.s32 256, 256
      %32 = vsyncadd [#allocation6], %s31
      %s33 = sshll.u32 [#allocation5], 4
      %s34 = int_to_ptr.vmem [resolvable:$true] %s33
      %39 = dma.hbm_to_vmem [thread:$0]  %s1, 256, %s34, [#allocation6], 128, 128, 8
    $region9: #{tpu_custom_call.1} parent=1 // pred_fallthru
      _
    // Predicated region
    $region10: #{tpu_custom_call.1} parent=1 // pred_check
      _
    $region11: #{tpu_custom_call.1} parent=1 // pred_check_branch
      %41 = sbr.rel (0) target = $region13
    $region12: #{tpu_custom_call.1} parent=1 // pred_region
      %s43 = ssub.s32 2048, 2048
      %44 = vsyncadd [#allocation6], %s43
      %s45 = sshll.u32 [#allocation7], 4
      %s46 = int_to_ptr.vmem [resolvable:$true] %s45
      %51 = dma.hbm_to_vmem [thread:$0]  %s2, 2048, %s46, [#allocation6], 128, 128, 8
    $region13: #{tpu_custom_call.1} parent=1 // pred_fallthru
      _
    // Predicated region
    $region14: #{tpu_custom_call.1} parent=1 // pred_check
      _
    $region15: #{tpu_custom_call.1} parent=1 // pred_check_branch
      %53 = sbr.rel (0) target = $region17
    $region16: #{tpu_custom_call.1} parent=1 // pred_region
      %s55 = ssub.s32 2048, 2048
      %56 = vsyncadd [#allocation9], %s55
      %s57 = sshll.u32 [#allocation8], 4
      %s58 = int_to_ptr.vmem [resolvable:$true] %s57
      %63 = dma.hbm_to_vmem [thread:$0]  %s3, 2048, %s58, [#allocation9], 128, 128, 8
    $region17: #{tpu_custom_call.1} parent=1 // pred_fallthru
      _
    // Predicated region
    $region18: #{tpu_custom_call.1} parent=1 // pred_check
      _
    $region19: #{tpu_custom_call.1} parent=1 // pred_check_branch
      %65 = sbr.rel (0) target = $region21
    $region20: #{tpu_custom_call.1} parent=1 // pred_region
      _
    $region21: #{tpu_custom_call.1} parent=1 // pred_fallthru
      _
    // Predicated region
    $region22: #{tpu_custom_call.1} parent=1 // pred_check
      _
    $region23: #{tpu_custom_call.1} parent=1 // pred_check_branch
      %67 = sbr.rel (0) target = $region25
    $region24: #{tpu_custom_call.1} parent=1 // pred_region
      _
    $region25: #{tpu_custom_call.1} parent=1 // pred_fallthru
      _
    // Predicated region
    $region26: #{tpu_custom_call.1} parent=1 // pred_check
      _
    $region27: #{tpu_custom_call.1} parent=1 // pred_check_branch
      %69 = sbr.rel (0) target = $region29
    $region28: #{tpu_custom_call.1} parent=1 // pred_region
      %70 = dma.done [#allocation3], 32
    $region29: #{tpu_custom_call.1} parent=1 // pred_fallthru
      _
    // Predicated region
    $region30: #{tpu_custom_call.1} parent=1 // pred_check
      _
    $region31: #{tpu_custom_call.1} parent=1 // pred_check_branch
      %72 = sbr.rel (0) target = $region33
    $region32: #{tpu_custom_call.1} parent=1 // pred_region
      %73 = dma.done [#allocation6], 256
    $region33: #{tpu_custom_call.1} parent=1 // pred_fallthru
      _
    // Predicated region
    $region34: #{tpu_custom_call.1} parent=1 // pred_check
      _
    $region35: #{tpu_custom_call.1} parent=1 // pred_check_branch
      %75 = sbr.rel (0) target = $region37
    $region36: #{tpu_custom_call.1} parent=1 // pred_region
      %76 = dma.done [#allocation6], 2048
    $region37: #{tpu_custom_call.1} parent=1 // pred_fallthru
      _
    // Predicated region
    $region38: #{tpu_custom_call.1} parent=1 // pred_check
      _
    $region39: #{tpu_custom_call.1} parent=1 // pred_check_branch
      %78 = sbr.rel (0) target = $region41
    $region40: #{tpu_custom_call.1} parent=1 // pred_region
      %79 = dma.done [#allocation9], 2048
    $region41: #{tpu_custom_call.1} parent=1 // pred_fallthru
      _
    %v80 = vld [vmem:[#allocation2] sm:$0x3]
    %v81 = vld [vmem:[#allocation5] sm:$0xff]
    %v82 = vld [vmem:[#allocation5 + $0x8] sm:$0xff]
    %v83 = vld [vmem:[#allocation7] sm:$0xff]
    %v84 = vld [vmem:[#allocation7 + $0x8] sm:$0xff]
    %v85 = vld [vmem:[#allocation7 + $0x10] sm:$0xff]
    %v86 = vld [vmem:[#allocation7 + $0x18] sm:$0xff]
    %v87 = vld [vmem:[#allocation7 + $0x20] sm:$0xff]
    %v88 = vld [vmem:[#allocation7 + $0x28] sm:$0xff]
    %v89 = vld [vmem:[#allocation7 + $0x30] sm:$0xff]
    %v90 = vld [vmem:[#allocation7 + $0x38] sm:$0xff]
    %v91 = vld [vmem:[#allocation7 + $0x40] sm:$0xff]
    %v92 = vld [vmem:[#allocation7 + $0x48] sm:$0xff]
    %v93 = vld [vmem:[#allocation7 + $0x50] sm:$0xff]
    %v94 = vld [vmem:[#allocation7 + $0x58] sm:$0xff]
    %v95 = vld [vmem:[#allocation7 + $0x60] sm:$0xff]
    %v96 = vld [vmem:[#allocation7 + $0x68] sm:$0xff]
    %v97 = vld [vmem:[#allocation7 + $0x70] sm:$0xff]
    %v98 = vld [vmem:[#allocation7 + $0x78] sm:$0xff]
    %99 = vmatprep.subr.mxu0 0.0
    %100 = vmatpush1.msra.mxu0 %v98
    %101 = vmatprep.subr.mxu0 0.0
    %102 = vmatpush1.msra.mxu0 %v97
    %103 = vmatprep.subr.mxu0 0.0
    %104 = vmatpush1.msra.mxu0 %v96
    %105 = vmatprep.subr.mxu0 0.0
    %106 = vmatpush1.msra.mxu0 %v95
    %107 = vmatprep.subr.mxu0 0.0
    %108 = vmatpush1.msra.mxu0 %v94
    %109 = vmatprep.subr.mxu0 0.0
    %110 = vmatpush1.msra.mxu0 %v93
    %111 = vmatprep.subr.mxu0 0.0
    %112 = vmatpush1.msra.mxu0 %v92
    %113 = vmatprep.subr.mxu0 0.0
    %114 = vmatpush1.msra.mxu0 %v91
    %115 = vmatprep.subr.mxu0 0.0
    %116 = vmatpush1.msra.mxu0 %v90
    %117 = vmatprep.subr.mxu0 0.0
    %118 = vmatpush1.msra.mxu0 %v89
    %119 = vmatprep.subr.mxu0 0.0
    %120 = vmatpush1.msra.mxu0 %v88
    %121 = vmatprep.subr.mxu0 0.0
    %122 = vmatpush1.msra.mxu0 %v87
    %123 = vmatprep.subr.mxu0 0.0
    %124 = vmatpush1.msra.mxu0 %v86
    %125 = vmatprep.subr.mxu0 0.0
    %126 = vmatpush1.msra.mxu0 %v85
    %127 = vmatprep.subr.mxu0 0.0
    %128 = vmatpush1.msra.mxu0 %v84
    %129 = vmatprep.subr.mxu0 0.0
    %130 = vmatpush1.msra.mxu0 %v83
    %131 = vmatprep.subr.mxu0 0.0
    %132 = vmatpush2.msra.mxu0 0.0
    %133 = vmatprep.subr.mxu0 0.0
    %134 = vmatpush2.msra.mxu0 0.0
    %135 = vmatprep.subr.mxu0 0.0
    %136 = vmatpush2.msra.mxu0 0.0
    %137 = vmatprep.subr.mxu0 0.0
    %138 = vmatpush2.msra.mxu0 0.0
    %139 = vmatprep.subr.mxu0 0.0
    %140 = vmatpush2.msra.mxu0 0.0
    %141 = vmatprep.subr.mxu0 0.0
    %142 = vmatpush2.msra.mxu0 0.0
    %143 = vmatprep.subr.mxu0 0.0
    %144 = vmatpush2.msra.mxu0 0.0
    %145 = vmatprep.subr.mxu0 0.0
    %146 = vmatpush2.msra.mxu0 0.0
    %147 = vmatprep.subr.mxu0 0.0
    %148 = vmatpush2.msra.mxu0 0.0
    %149 = vmatprep.subr.mxu0 0.0
    %150 = vmatpush2.msra.mxu0 0.0
    %151 = vmatprep.subr.mxu0 0.0
    %152 = vmatpush2.msra.mxu0 0.0
    %153 = vmatprep.subr.mxu0 0.0
    %154 = vmatpush2.msra.mxu0 0.0
    %155 = vmatprep.subr.mxu0 0.0
    %156 = vmatpush2.msra.mxu0 0.0
    %157 = vmatprep.subr.mxu0 0.0
    %158 = vmatpush2.msra.mxu0 0.0
    %159 = vmatprep.subr.mxu0 0.0
    %160 = vmatpush2.msra.mxu0 0.0
    %161 = vmatprep.subr.mxu0 0.0
    %162 = vmatpush2.msra.mxu0 0.0
    %163 = vmatprep.mubr.f32.mxu0 0.0
    %164 = vmatmul.mubr.f32.gmra.mxu0 %v80
    %v165 = vpop.f32.mrf.mxu0
    %v166 = vadd.f32 0.0, %v165
    %v167 = vpop.f32.mrf.mxu0
    %168 = vdwg.mxu0
    %v169 = vld [vmem:[#allocation8] sm:$0xff]
    %v170 = vld [vmem:[#allocation8 + $0x8] sm:$0xff]
    %v171 = vld [vmem:[#allocation8 + $0x10] sm:$0xff]
    %v172 = vld [vmem:[#allocation8 + $0x18] sm:$0xff]
    %v173 = vld [vmem:[#allocation8 + $0x20] sm:$0xff]
    %v174 = vld [vmem:[#allocation8 + $0x28] sm:$0xff]
    %v175 = vld [vmem:[#allocation8 + $0x30] sm:$0xff]
    %v176 = vld [vmem:[#allocation8 + $0x38] sm:$0xff]
    %v177 = vld [vmem:[#allocation8 + $0x40] sm:$0xff]
    %v178 = vld [vmem:[#allocation8 + $0x48] sm:$0xff]
    %v179 = vld [vmem:[#allocation8 + $0x50] sm:$0xff]
    %v180 = vld [vmem:[#allocation8 + $0x58] sm:$0xff]
    %v181 = vld [vmem:[#allocation8 + $0x60] sm:$0xff]
    %v182 = vld [vmem:[#allocation8 + $0x68] sm:$0xff]
    %v183 = vld [vmem:[#allocation8 + $0x70] sm:$0xff]
    %v184 = vld [vmem:[#allocation8 + $0x78] sm:$0xff]
    %185 = vmatprep.subr.mxu0 0.0
    %186 = vmatpush1.msra.mxu0 %v184
    %187 = vmatprep.subr.mxu0 0.0
    %188 = vmatpush1.msra.mxu0 %v183
    %189 = vmatprep.subr.mxu0 0.0
    %190 = vmatpush1.msra.mxu0 %v182
    %191 = vmatprep.subr.mxu0 0.0
    %192 = vmatpush1.msra.mxu0 %v181
    %193 = vmatprep.subr.mxu0 0.0
    %194 = vmatpush1.msra.mxu0 %v180
    %195 = vmatprep.subr.mxu0 0.0
    %196 = vmatpush1.msra.mxu0 %v179
    %197 = vmatprep.subr.mxu0 0.0
    %198 = vmatpush1.msra.mxu0 %v178
    %199 = vmatprep.subr.mxu0 0.0
    %200 = vmatpush1.msra.mxu0 %v177
    %201 = vmatprep.subr.mxu0 0.0
    %202 = vmatpush1.msra.mxu0 %v176
    %203 = vmatprep.subr.mxu0 0.0
    %204 = vmatpush1.msra.mxu0 %v175
    %205 = vmatprep.subr.mxu0 0.0
    %206 = vmatpush1.msra.mxu0 %v174
    %207 = vmatprep.subr.mxu0 0.0
    %208 = vmatpush1.msra.mxu0 %v173
    %209 = vmatprep.subr.mxu0 0.0
    %210 = vmatpush1.msra.mxu0 %v172
    %211 = vmatprep.subr.mxu0 0.0
    %212 = vmatpush1.msra.mxu0 %v171
    %213 = vmatprep.subr.mxu0 0.0
    %214 = vmatpush1.msra.mxu0 %v170
    %215 = vmatprep.subr.mxu0 0.0
    %216 = vmatpush1.msra.mxu0 %v169
    %217 = vmatprep.subr.mxu0 0.0
    %218 = vmatpush2.msra.mxu0 0.0
    %219 = vmatprep.subr.mxu0 0.0
    %220 = vmatpush2.msra.mxu0 0.0
    %221 = vmatprep.subr.mxu0 0.0
    %222 = vmatpush2.msra.mxu0 0.0
    %223 = vmatprep.subr.mxu0 0.0
    %224 = vmatpush2.msra.mxu0 0.0
    %225 = vmatprep.subr.mxu0 0.0
    %226 = vmatpush2.msra.mxu0 0.0
    %227 = vmatprep.subr.mxu0 0.0
    %228 = vmatpush2.msra.mxu0 0.0
    %229 = vmatprep.subr.mxu0 0.0
    %230 = vmatpush2.msra.mxu0 0.0
    %231 = vmatprep.subr.mxu0 0.0
    %232 = vmatpush2.msra.mxu0 0.0
    %233 = vmatprep.subr.mxu0 0.0
    %234 = vmatpush2.msra.mxu0 0.0
    %235 = vmatprep.subr.mxu0 0.0
    %236 = vmatpush2.msra.mxu0 0.0
    %237 = vmatprep.subr.mxu0 0.0
    %238 = vmatpush2.msra.mxu0 0.0
    %239 = vmatprep.subr.mxu0 0.0
    %240 = vmatpush2.msra.mxu0 0.0
    %241 = vmatprep.subr.mxu0 0.0
    %242 = vmatpush2.msra.mxu0 0.0
    %243 = vmatprep.subr.mxu0 0.0
    %244 = vmatpush2.msra.mxu0 0.0
    %245 = vmatprep.subr.mxu0 0.0
    %246 = vmatpush2.msra.mxu0 0.0
    %247 = vmatprep.subr.mxu0 0.0
    %248 = vmatpush2.msra.mxu0 0.0
    %249 = vmatprep.mubr.f32.mxu0 0.0
    %250 = vmatmul.mubr.f32.gmra.mxu0 %v81
    %v251 = vpop.f32.mrf.mxu0
    %v252 = vadd.f32 0.0, %v251
    %v253 = vpop.f32.mrf.mxu0
    %254 = vmatprep.mubr.f32.mxu0 0.0
    %255 = vmatmul.mubr.f32.gmra.mxu0 %v82
    %v256 = vpop.f32.mrf.mxu0
    %v257 = vadd.f32 0.0, %v256
    %v258 = vpop.f32.mrf.mxu0
    %259 = vdwg.mxu0
    %v262 = vunpack.c.l.s4 1966171168
    %v263 = vunpack.c.0.s8 %v262
    %v264 = vlaneseq
    %v265 = vshrl.u32 %v264, 7
    %v266 = vsub.s32 %v263, %v265
    %v267 = vrot.slane %v166, %v266
    %v268 = vcombine.high %v267, %v267
    %v270 = vunpack.c.l.s4 1966171168
    %v271 = vunpack.c.0.s8 %v270
    %v272 = vlaneseq
    %v273 = vshrl.u32 %v272, 7
    %v274 = vsub.s32 %v271, %v273
    %v275 = vrot.slane %v267, %v274
    %v277 = vunpack.c.l.s4 1966171168
    %v278 = vunpack.c.0.s8 %v277
    %v279 = vlaneseq
    %v280 = vshrl.u32 %v279, 7
    %v281 = vsub.s32 %v278, %v280
    %v282 = vrot.slane %v268, %v281
    %v283 = vlaneseq
    %v284 = vshrl.u32 %v283, 7
    %v285 = vsub.s32 0, %v284
    %v286 = vrot.slane %v275, %v285
    %v287 = vlaneseq
    %v288 = vshrl.u32 %v287, 7
    %v289 = vsub.s32 0, %v288
    %v290 = vrot.slane %v282, %v289
    %v293 = vadd.f32 %v252, %v286
    %v294 = vadd.f32 %v257, %v290
    %v295 = vld [vmem:[%s4] sm:$0x1]
    %v297 = vlaneseq
    %v298 = vshrl.u32 %v297, 7
    %v299 = vsub.s32 0, %v298
    %v300 = vrot.slane %v295, %v299
    %v302 = vadd.f32 %v293, %v300
    %v303 = vadd.f32 %v294, %v300
    %v304 = vtanh.pop %v302
    %v305 = vtanh.pop %v303
    %v306 = vld [vmem:[%s5] sm:$0x1]
    %v308 = vlaneseq
    %v309 = vshrl.u32 %v308, 7
    %v310 = vsub.s32 0, %v309
    %v311 = vrot.slane %v306, %v310
    %v313 = vmul.f32 %v304, %v311
    %v314 = vmul.f32 %v305, %v311
    %315 = vadd.xlane.f32.xlu0 %v313
    %v316 = vpop.xlane.xlu0 %315
    %317 = vadd.xlane.f32.xlu0 %v314
    %v318 = vpop.xlane.xlu0 %317
    %v321 = vlaneseq
    %v322 = vand.u32 %v321, 127
    %v323 = vlaneseq
    %v324 = vshrl.u32 %v323, 7
    %v325 = vsub.s32 %v322, %v324
    %v326 = vrot.slane %v316, %v325
    %v327 = vlaneseq
    %v328 = vshrl.u32 %v327, 7
    %v329 = vsub.s32 %v322, %v328
    %v330 = vrot.slane %v318, %v329
    %vm331 = vcmask 1041409
    %v332 = vsel %vm331, %v330, %v326
    %vm334 = vcmask 58368
    %v335 = vsel %vm334, %v332, -inf
    %336 = vmax.xlane.f32.xlu0 %v335
    %v337 = vpop.xlane.xlu0 %336
    %v339 = vlaneseq
    %v340 = vshrl.u32 %v339, 7
    %v341 = vsub.s32 0, %v340
    %v342 = vrot.slane %v337, %v341
    %v343 = vlaneseq
    %v344 = vshrl.u32 %v343, 7
    %v345 = vsub.s32 1, %v344
    %v346 = vrot.slane %v337, %v345
    %v349 = vsub.f32 %v316, %v342
    %v350 = vsub.f32 %v318, %v346
    %v351 = vmul.f32 %v349, 1.442695
    %v352 = vpow.pop %v351
    %v353 = vmul.f32 %v350, 1.442695
    %v354 = vpow.pop %v353
    %357 = vset.pattern.permute.xlu0 0
    %358 = vperm.xlu0 %357, %v352
    %v359 = vpop.permute.xlu0 %358
    %360 = vset.pattern.permute.xlu0 0
    %361 = vperm.xlu0 %360, %v354
    %v362 = vpop.permute.xlu0 %361
    %v363 = vlaneseq
    %v364 = vshrl.u32 %v363, 7
    %v365 = vsub.s32 %v322, %v364
    %v366 = vrot.slane %v359, %v365
    %v367 = vlaneseq
    %v368 = vshrl.u32 %v367, 7
    %v369 = vsub.s32 %v322, %v368
    %v370 = vrot.slane %v362, %v369
    %v371 = vsel %vm331, %v370, %v366
    %v373 = vsel %vm334, %v371, 0.0
    %374 = vadd.xlane.f32.xlu0 %v373
    %v375 = vpop.xlane.xlu0 %374
    %v377 = vlaneseq
    %v378 = vshrl.u32 %v377, 7
    %v379 = vsub.s32 0, %v378
    %v380 = vrot.slane %v375, %v379
    %v381 = vlaneseq
    %v382 = vshrl.u32 %v381, 7
    %v383 = vsub.s32 1, %v382
    %v384 = vrot.slane %v375, %v383
    %v387 = vrcp.pop %v380
    %v388 = vmul.f32 %v352, %v387
    %v389 = vrcp.pop %v384
    %v390 = vmul.f32 %v354, %v389
    %392 = vset.pattern.permute.xlu0 0
    %393 = vperm.xlu0 %392, %v388
    %v394 = vpop.permute.xlu0 %393
    %397 = vset.pattern.permute.xlu0 0
    %398 = vperm.xlu0 %397, %v390
    %v399 = vpop.permute.xlu0 %398
    %v401 = vmul.f32 %v394, %v81
    %v402 = vmul.f32 %v399, %v82
    %v403 = vrot.slane %v401, 4
    %v404 = vadd.f32 %v401, %v403
    %v405 = vrot.slane %v404, 2
    %v406 = vadd.f32 %v404, %v405
    %v407 = vrot.slane %v406, 1
    %v408 = vadd.f32 %v406, %v407
    %v409 = vrot.slane %v402, 4
    %v410 = vadd.f32 %v402, %v409
    %v411 = vrot.slane %v410, 2
    %v412 = vadd.f32 %v410, %v411
    %v413 = vrot.slane %v412, 1
    %v414 = vadd.f32 %v412, %v413
    %v417 = vsel %vm331, %v414, %v408
    %419 = vst [vmem:[#allocation10] sm:$0x3] %v417
    %v420 = vlaneseq
    %v421 = vshrl.u32 %v420, 7
    %v422 = vsub.s32 %v322, %v421
    %v423 = vrot.slane %v394, %v422
    %v424 = vlaneseq
    %v425 = vshrl.u32 %v424, 7
    %v426 = vsub.s32 %v322, %v425
    %v427 = vrot.slane %v399, %v426
    %v428 = vsel %vm331, %v427, %v423
    %430 = vst.msk [vmem:[#allocation11] sm:$0x3] %vm334, %v428
    // Predicated region
    $region42: #{tpu_custom_call.1} parent=1 // pred_check
      _
    $region43: #{tpu_custom_call.1} parent=1 // pred_check_branch
      %432 = sbr.rel (0) target = $region45
    $region44: #{tpu_custom_call.1} parent=1 // pred_region
      %s434 = ssub.s32 32, 32
      %435 = vsyncadd [#allocation4], %s434
      %s437 = sshll.u32 [#allocation10], 4
      %s438 = int_to_ptr.vmem [resolvable:$true] %s437
      %440 = dma.vmem_to_hbm [thread:$0]  %s438, 32, %s6, [#allocation4]
    $region45: #{tpu_custom_call.1} parent=1 // pred_fallthru
      _
    // Predicated region
    $region46: #{tpu_custom_call.1} parent=1 // pred_check
      _
    $region47: #{tpu_custom_call.1} parent=1 // pred_check_branch
      %442 = sbr.rel (0) target = $region49
    $region48: #{tpu_custom_call.1} parent=1 // pred_region
      %s444 = ssub.s32 32, 32
      %445 = vsyncadd [#allocation12], %s444
      %s447 = sshll.u32 [#allocation11], 4
      %s448 = int_to_ptr.vmem [resolvable:$true] %s447
      %450 = dma.vmem_to_hbm [thread:$0]  %s448, 32, %s7, [#allocation12]
    $region49: #{tpu_custom_call.1} parent=1 // pred_fallthru
      _
    // Predicated region
    $region50: #{tpu_custom_call.1} parent=1 // pred_check
      _
    $region51: #{tpu_custom_call.1} parent=1 // pred_check_branch
      %452 = sbr.rel (0) target = $region53
    $region52: #{tpu_custom_call.1} parent=1 // pred_region
      %453 = dma.done [#allocation4], 32
    $region53: #{tpu_custom_call.1} parent=1 // pred_fallthru
      _
    // Predicated region
    $region54: #{tpu_custom_call.1} parent=1 // pred_check
      _
    $region55: #{tpu_custom_call.1} parent=1 // pred_check_branch
      %455 = sbr.rel (0) target = $region57
    $region56: #{tpu_custom_call.1} parent=1 // pred_region
      %456 = dma.done [#allocation12], 32
    $region57: #{tpu_custom_call.1} parent=1 // pred_fallthru
      _
    %457 = vsyncpa [#allocation3], 1
    %458 = vsyncpa [#allocation6], 1
    %459 = vsyncpa [#allocation9], 1
    %460 = vsyncpa [#allocation4], 1
    %461 = vsyncpa [#allocation12], 1

</llo_original>
